<compile_context>
chip_gen: v6e
topology: v6e:2x2x1
jax: 0.10.0
libtpu: 0.0.40
codegen_flags: <defaults>
</compile_context>

<pallas_src>
import functools

import jax
import jax.numpy as jnp
from jax.experimental import pallas as pl
from jax.experimental.pallas import tpu as pltpu


# --------------------------------------------------------------------------- #
# Kernel: one grid step = one block of `bt` batch elements.                    #
# --------------------------------------------------------------------------- #
def gbbmr_kernel(x_ref, w1_ref, l1_ref, b1_ref, w2_ref, p_ref, bp_ref, out_ref):
    HS2 = out_ref.shape[1] // 2
    cdt = w1_ref.dtype                       # matmul operand dtype (bf16 / f32)

    leaky = lambda v: jnp.where(v >= 0.0, v, 0.1 * v)   # LeakyReLU(0.1)

    # ---- fused first-layer weight matmul: (bt*V, in_dim) @ (in_dim, 2*HS2) ----
    xw = jnp.dot(x_ref[...], w1_ref[...],
                 preferred_element_type=jnp.float32)               # f32 (btV, 2*HS2)

    # ---- first GraphConv (L applied post-reassociation), per branch ----------
    h_xy = leaky(jnp.dot(l1_ref[0], xw[:, :HS2].astype(cdt),
                         preferred_element_type=jnp.float32) + b1_ref[0])
    h_z = leaky(jnp.dot(l1_ref[1], xw[:, HS2:].astype(cdt),
                        preferred_element_type=jnp.float32) + b1_ref[1])
    # (Dropout(0.5) = eval identity)

    # ---- second-layer weight matmuls -----------------------------------------
    hw_xy = jnp.dot(h_xy.astype(cdt), w2_ref[0],
                    preferred_element_type=jnp.float32)             # (btV, HS2)
    hw_z = jnp.dot(h_z.astype(cdt), w2_ref[1],
                   preferred_element_type=jnp.float32)              # (btV, HS2)

    # ---- fused [L2 ; mesh2pose o L2] projection (beta folded into xy branch) --
    score = jnp.dot(p_ref[0], hw_xy.astype(cdt),
                    preferred_element_type=jnp.float32) + bp_ref[0]  # (btT, HS2)
    hm_z = jnp.dot(p_ref[1], hw_z.astype(cdt),
                   preferred_element_type=jnp.float32) + bp_ref[1]   # (btT, HS2)

    # ---- SoftHeatmap: spatial softmax (f32, EUP reciprocal) -------------------
    m = jnp.max(score, axis=1, keepdims=True)
    e = jnp.exp(score - m)
    sm = e * pl.reciprocal(jnp.sum(e, axis=1, keepdims=True), approx=True)
    depth = sm * hm_z

    # ---- single lane-dense store: [latent | depth] -> (btT, 2*HS2 = 128) ------
    out_ref[...] = jnp.concatenate([sm, depth], axis=1)


# --------------------------------------------------------------------------- #
# Wrapper                                                                      #
# --------------------------------------------------------------------------- #
def _pick_batch_block(batch, num_vert, num_total, *, row_cap=512, min_steps=1):
    """Largest divisor bt of batch with bt*V <= row_cap, >= min_steps grid steps,
    and (8,128)-legal block rows whenever the batch is split."""
    best = None
    for cand in range(1, batch + 1):
        if batch % cand:
            continue
        if cand * num_vert > row_cap:
            continue
        steps = batch // cand
        if steps < min_steps:
            continue
        if steps > 1 and ((cand * num_vert) % 8 or (cand * num_total) % 8):
            continue
        best = cand
    if best is None:
        best = batch            # single step: blocks are the full arrays
    return best


def _blockdiag(mat, bt):
    if bt == 1:
        return mat
    return jnp.kron(jnp.eye(bt, dtype=mat.dtype), mat)


def gbbmr_forward(x, params, *, hs, num_vert, num_joint,
                  batch_block=None, matmul_dtype=jnp.bfloat16):
    B, V, in_dim = x.shape
    assert V == num_vert
    J = num_joint
    T = V + J
    HS2 = hs * hs

    if batch_block is None:
        # Only v7x shards the parallel grid axis across 2 TensorCores; everywhere
        # else a single big step amortizes per-step overhead best.
        kind = jax.devices()[0].device_kind.lower()
        min_steps = 2 if ("v7" in kind and B >= 2) else 1
        bt = _pick_batch_block(B, V, T, min_steps=min_steps)
    else:
        bt = batch_block
    assert B % bt == 0, "batch_block must divide batch"
    grid = B // bt
    if grid > 1:
        assert (bt * V) % 8 == 0 and (bt * T) % 8 == 0, (
            "block row counts (bt*V, bt*(V+J)) must be multiples of 8 when the "
            "batch is split across grid steps; choose a different batch_block")

    f32 = jnp.float32
    cast = lambda a: a.astype(matmul_dtype)

    # ---- constant preprocessing hoisted out of the kernel (runs once in XLA) --
    def lap(A):                                          # Laplacian normalisation
        return A / (jnp.sum(A, axis=1, keepdims=True) + 1e-5)

    L_xy1, L_z1 = lap(params["adj_xy1"]), lap(params["adj_z1"])
    L_xy2, L_z2 = lap(params["adj_xy2"]), lap(params["adj_z2"])
    beta = params["beta"]                                # (T, 1)
    beta_m, beta_j = beta[:V], beta[V:]

    # first-layer weights fused along N -> one (in_dim, 2*HS2) matmul in-kernel
    w1 = jnp.concatenate([params["w_xy1"], params["w_z1"]], axis=1)      # (in, 2*HS2)
    b1 = jnp.stack([params["b_xy1"], params["b_z1"]], axis=0)            # (2, 1, HS2)
    w2 = jnp.stack([params["w_xy2"], params["w_z2"]], axis=0)            # (2, HS2, HS2)

    # beta and mesh2pose folded through the second GraphConv's L:
    #   score   = P_xy @ (h_xy @ W_xy2) + BP_xy
    #   hm_z    = P_z  @ (h_z  @ W_z2 ) + BP_z
    p_xy = jnp.concatenate([beta_m * L_xy2,
                            beta_j * (params["w_hm"] @ L_xy2)], axis=0)  # (T, V)
    p_z = jnp.concatenate([L_z2, params["w_dm"] @ L_z2], axis=0)         # (T, V)
    bp_xy = jnp.concatenate(
        [beta_m * params["b_xy2"],
         beta_j * (jnp.sum(params["w_hm"], axis=1, keepdims=True) * params["b_xy2"]
                   + params["b_hm"])], axis=0)                           # (T, HS2)
    bp_z = jnp.concatenate(
        [jnp.broadcast_to(params["b_z2"], (V, HS2)),
         jnp.sum(params["w_dm"], axis=1, keepdims=True) * params["b_z2"]
         + params["b_dm"]], axis=0)                                      # (T, HS2)

    # block-diagonal expansion over the batch block (batch folded into MXU rows)
    l1 = jnp.stack([_blockdiag(L_xy1, bt), _blockdiag(L_z1, bt)], axis=0)   # (2,btV,btV)
    p = jnp.stack([_blockdiag(p_xy, bt), _blockdiag(p_z, bt)], axis=0)      # (2,btT,btV)
    bp = jnp.stack([jnp.tile(bp_xy, (bt, 1)), jnp.tile(bp_z, (bt, 1))], axis=0)

    x_flat = cast(x.reshape(B * V, in_dim))
    args = (x_flat, cast(w1), cast(l1), b1.astype(f32), cast(w2),
            cast(p), bp.astype(f32))

    def const_spec(a):
        return pl.BlockSpec(a.shape, lambda i, _nd=a.ndim: (0,) * _nd)

    in_specs = [pl.BlockSpec((bt * V, in_dim), lambda i: (i, 0))] + \
               [const_spec(a) for a in args[1:]]
    out_specs = pl.BlockSpec((bt * T, 2 * HS2), lambda i: (i, 0))
    out_shape = jax.ShapeDtypeStruct((B * T, 2 * HS2), f32)

    packed = pl.pallas_call(
        gbbmr_kernel,
        grid=(grid,),
        in_specs=in_specs,
        out_specs=out_specs,
        out_shape=out_shape,
        compiler_params=pltpu.CompilerParams(dimension_semantics=("parallel",)),
    )(*args)

    packed = packed.reshape(B, T, 2 * HS2)
    lhm = packed[:, :, :HS2]                             # latent heatmaps (B, T, HS2)
    dm = packed[:, :, HS2:]                              # depth maps      (B, T, HS2)

    # Coord head: three trivial reductions, kept out of the kernel so its only
    # output is the lane-dense packed heatmap slab (XLA fuses these).
    pix = jnp.arange(HS2)
    wxy = jnp.stack([pix % hs, pix // hs], axis=1).astype(f32)       # (HS2, 2)
    soft_xy = jnp.einsum("btp,pc->btc", lhm, wxy)
    coord_xy = soft_xy / (hs // 2) - 1.0
    coord_z = jnp.sum(dm, axis=-1, keepdims=True)
    coord = jnp.concatenate([coord_xy, coord_z], axis=-1)            # (B, T, 3)

    return coord, lhm.reshape(B, T, hs, hs), dm.reshape(B, T, hs, hs)


# --------------------------------------------------------------------------- #
# Synthetic parameters + pure-JAX reference (mirrors the PyTorch forward)      #
# --------------------------------------------------------------------------- #
def init_params(key, in_dim, num_vert, num_joint, hs):
    HS2 = hs * hs
    V, J = num_vert, num_joint
    T = V + J
    ks = jax.random.split(key, 16)

    def lin(k, fin, fout, scale=0.1):
        kw, kb = jax.random.split(k)
        return (scale * jax.random.normal(kw, (fin, fout), jnp.float32),   # fc weight^T
                scale * jax.random.normal(kb, (1, fout), jnp.float32))     # fc bias

    w_xy1, b_xy1 = lin(ks[0], in_dim, HS2)
    w_xy2, b_xy2 = lin(ks[1], HS2, HS2)
    w_z1, b_z1 = lin(ks[2], in_dim, HS2)
    w_z2, b_z2 = lin(ks[3], HS2, HS2)

    def adj(k):  # eye init (as in the module) + perturbation so matmuls are non-trivial
        return jnp.eye(V, dtype=jnp.float32) + 0.05 * jax.random.normal(k, (V, V), jnp.float32)

    return dict(
        adj_xy1=adj(ks[4]), adj_xy2=adj(ks[5]), adj_z1=adj(ks[6]), adj_z2=adj(ks[7]),
        w_xy1=w_xy1, b_xy1=b_xy1, w_xy2=w_xy2, b_xy2=b_xy2,
        w_z1=w_z1, b_z1=b_z1, w_z2=w_z2, b_z2=b_z2,
        w_hm=0.1 * jax.random.normal(ks[8], (J, V), jnp.float32),    # mesh2pose_hm weight
        b_hm=0.1 * jax.random.normal(ks[9], (J, 1), jnp.float32),
        w_dm=0.1 * jax.random.normal(ks[10], (J, V), jnp.float32),   # mesh2pose_dm weight
        b_dm=0.1 * jax.random.normal(ks[11], (J, 1), jnp.float32),
        beta=1.0 + 0.1 * jax.random.normal(ks[12], (T, 1), jnp.float32),  # depthwise 1x1 conv
    )


def gbbmr_reference(x, p, *, hs, num_joint):
    B, V, in_dim = x.shape
    HS2 = hs * hs

    def lap(A):
        return A / (jnp.sum(A, axis=1, keepdims=True) + 1e-5)

    def gconv(adj, inp, W, b):
        return jnp.einsum("vu,bud->bvd", lap(adj), inp) @ W + b

    leaky = lambda v: jnp.where(v >= 0, v, 0.1 * v)

    h = leaky(gconv(p["adj_xy1"], x, p["w_xy1"], p["b_xy1"]))
    hm_xy_mesh = gconv(p["adj_xy2"], h, p["w_xy2"], p["b_xy2"])
    hz = leaky(gconv(p["adj_z1"], x, p["w_z1"], p["b_z1"]))
    hm_z_mesh = gconv(p["adj_z2"], hz, p["w_z2"], p["b_z2"])

    hm_xy_joint = jnp.einsum("jv,bvp->bjp", p["w_hm"], hm_xy_mesh) + p["b_hm"]
    hm_z_joint = jnp.einsum("jv,bvp->bjp", p["w_dm"], hm_z_mesh) + p["b_dm"]
    hm_xy = jnp.concatenate([hm_xy_mesh, hm_xy_joint], axis=1)
    hm_z = jnp.concatenate([hm_z_mesh, hm_z_joint], axis=1)

    score = hm_xy * p["beta"]
    sm = jax.nn.softmax(score, axis=2)
    pidx = jnp.arange(HS2)
    wx = (pidx % hs).astype(jnp.float32)
    wy = (pidx // hs).astype(jnp.float32)
    soft_x = jnp.sum(sm * wx, axis=2)
    soft_y = jnp.sum(sm * wy, axis=2)
    depth = sm * hm_z
    coord_z = jnp.sum(depth, axis=2)
    half = hs // 2
    coord = jnp.stack([soft_x / half - 1.0, soft_y / half - 1.0, coord_z], axis=2)
    return coord, sm.reshape(B, -1, hs, hs), depth.reshape(B, -1, hs, hs)


if __name__ == "__main__":
    B, in_dim, V, J, hs = 2, 32, 16, 8, 8
    key = jax.random.PRNGKey(0)
    kx, kp = jax.random.split(key)
    x = jax.random.normal(kx, (B, V, in_dim), jnp.float32)
    params = init_params(kp, in_dim, V, J, hs)

    fwd = jax.jit(functools.partial(gbbmr_forward, hs=hs, num_vert=V, num_joint=J))
    coord, lhm, dm = fwd(x, params)
    jax.block_until_ready((coord, lhm, dm))

    rc, rl, rd = gbbmr_reference(x, params, hs=hs, num_joint=J)
    for name, got, ref in (("coord", coord, rc), ("lhm", lhm, rl), ("dm", dm, rd)):
        err = float(jnp.max(jnp.abs(got - ref)))
        assert err < 5e-2, f"{name} mismatch vs reference: {err}"

    print("KERNEL_OK")
</pallas_src>

<mosaic_0001>
module attributes {stable_mosaic.version = 11 : i64} {
  func.func @gbbmr_kernel(%arg0: i32, %arg1: memref<32x32xbf16, #tpu.memory_space<vmem>>, %arg2: memref<32x128xbf16, #tpu.memory_space<vmem>>, %arg3: memref<2x32x32xbf16, #tpu.memory_space<vmem>>, %arg4: memref<2x1x64xf32, #tpu.memory_space<vmem>>, %arg5: memref<2x64x64xbf16, #tpu.memory_space<vmem>>, %arg6: memref<2x48x32xbf16, #tpu.memory_space<vmem>>, %arg7: memref<2x48x64xf32, #tpu.memory_space<vmem>>, %arg8: memref<48x128xf32, #tpu.memory_space<vmem>>) attributes {dimension_semantics = [#tpu.dimension_semantics<parallel>], iteration_bounds = array<i64: 1>, scalar_prefetch = 0 : i64, scratch_operands = 0 : i64, tpu.core_type = #tpu.core_type<tc>, window_params = [{transform_indices = @transform_0, window_bounds = array<i64: 32, 32>}, {pipeline_mode = #tpu.pipeline_mode<synchronous>, transform_indices = @transform_1, window_bounds = array<i64: 32, 128>}, {pipeline_mode = #tpu.pipeline_mode<synchronous>, transform_indices = @transform_2, window_bounds = array<i64: 2, 32, 32>}, {pipeline_mode = #tpu.pipeline_mode<synchronous>, transform_indices = @transform_3, window_bounds = array<i64: 2, 1, 64>}, {pipeline_mode = #tpu.pipeline_mode<synchronous>, transform_indices = @transform_4, window_bounds = array<i64: 2, 64, 64>}, {pipeline_mode = #tpu.pipeline_mode<synchronous>, transform_indices = @transform_5, window_bounds = array<i64: 2, 48, 32>}, {pipeline_mode = #tpu.pipeline_mode<synchronous>, transform_indices = @transform_6, window_bounds = array<i64: 2, 48, 64>}, {transform_indices = @transform_7, window_bounds = array<i64: 48, 128>}]} {
    %c0 = arith.constant 0 : index
    %c0_0 = arith.constant 0 : index
    %0 = vector.load %arg1[%c0, %c0_0] : memref<32x32xbf16, #tpu.memory_space<vmem>>, vector<32x32xbf16>
    %c0_1 = arith.constant 0 : index
    %c0_2 = arith.constant 0 : index
    %1 = vector.load %arg2[%c0_1, %c0_2] : memref<32x128xbf16, #tpu.memory_space<vmem>>, vector<32x128xbf16>
    %cst = arith.constant dense<0.000000e+00> : vector<32x128xf32>
    %2 = tpu.matmul %0, %1, %cst {dimension_numbers = #tpu.dot_dimension_numbers<[1], [0], [0], [1], [0, 0, 1, 1], [], []>} : vector<32x32xbf16>, vector<32x128xbf16>, vector<32x128xf32> -> vector<32x128xf32>
    %c0_3 = arith.constant 0 : index
    %c0_4 = arith.constant 0 : index
    %c0_5 = arith.constant 0 : index
    %3 = vector.load %arg3[%c0_3, %c0_4, %c0_5] : memref<2x32x32xbf16, #tpu.memory_space<vmem>>, vector<1x32x32xbf16>
    %4 = vector.shape_cast %3 : vector<1x32x32xbf16> to vector<32x32xbf16>
    %5 = vector.extract_strided_slice %2 {offsets = [0, 0], sizes = [32, 64], strides = [1, 1]} : vector<32x128xf32> to vector<32x64xf32>
    %6 = arith.truncf %5 : vector<32x64xf32> to vector<32x64xbf16>
    %cst_6 = arith.constant dense<0.000000e+00> : vector<32x64xf32>
    %7 = tpu.matmul %4, %6, %cst_6 {dimension_numbers = #tpu.dot_dimension_numbers<[1], [0], [0], [1], [0, 0, 1, 1], [], []>} : vector<32x32xbf16>, vector<32x64xbf16>, vector<32x64xf32> -> vector<32x64xf32>
    %c0_7 = arith.constant 0 : index
    %c0_8 = arith.constant 0 : index
    %c0_9 = arith.constant 0 : index
    %8 = vector.load %arg4[%c0_7, %c0_8, %c0_9] : memref<2x1x64xf32, #tpu.memory_space<vmem>>, vector<1x1x64xf32>
    %9 = vector.shape_cast %8 : vector<1x1x64xf32> to vector<1x64xf32>
    %10 = vector.broadcast %9 : vector<1x64xf32> to vector<32x64xf32>
    %11 = arith.addf %7, %10 : vector<32x64xf32>
    %cst_10 = arith.constant 0.000000e+00 : f32
    %12 = vector.broadcast %cst_10 : f32 to vector<32x64xf32>
    %13 = arith.cmpf oge, %11, %12 : vector<32x64xf32>
    %cst_11 = arith.constant 1.000000e-01 : f32
    %14 = vector.broadcast %cst_11 : f32 to vector<32x64xf32>
    %15 = arith.mulf %14, %11 : vector<32x64xf32>
    %16 = arith.select %13, %11, %15 : vector<32x64xi1>, vector<32x64xf32>
    %c1 = arith.constant 1 : index
    %c0_12 = arith.constant 0 : index
    %c0_13 = arith.constant 0 : index
    %17 = vector.load %arg3[%c1, %c0_12, %c0_13] : memref<2x32x32xbf16, #tpu.memory_space<vmem>>, vector<1x32x32xbf16>
    %18 = vector.shape_cast %17 : vector<1x32x32xbf16> to vector<32x32xbf16>
    %19 = vector.extract_strided_slice %2 {offsets = [0, 64], sizes = [32, 64], strides = [1, 1]} : vector<32x128xf32> to vector<32x64xf32>
    %20 = arith.truncf %19 : vector<32x64xf32> to vector<32x64xbf16>
    %cst_14 = arith.constant dense<0.000000e+00> : vector<32x64xf32>
    %21 = tpu.matmul %18, %20, %cst_14 {dimension_numbers = #tpu.dot_dimension_numbers<[1], [0], [0], [1], [0, 0, 1, 1], [], []>} : vector<32x32xbf16>, vector<32x64xbf16>, vector<32x64xf32> -> vector<32x64xf32>
    %c1_15 = arith.constant 1 : index
    %c0_16 = arith.constant 0 : index
    %c0_17 = arith.constant 0 : index
    %22 = vector.load %arg4[%c1_15, %c0_16, %c0_17] : memref<2x1x64xf32, #tpu.memory_space<vmem>>, vector<1x1x64xf32>
    %23 = vector.shape_cast %22 : vector<1x1x64xf32> to vector<1x64xf32>
    %24 = vector.broadcast %23 : vector<1x64xf32> to vector<32x64xf32>
    %25 = arith.addf %21, %24 : vector<32x64xf32>
    %cst_18 = arith.constant 0.000000e+00 : f32
    %26 = vector.broadcast %cst_18 : f32 to vector<32x64xf32>
    %27 = arith.cmpf oge, %25, %26 : vector<32x64xf32>
    %cst_19 = arith.constant 1.000000e-01 : f32
    %28 = vector.broadcast %cst_19 : f32 to vector<32x64xf32>
    %29 = arith.mulf %28, %25 : vector<32x64xf32>
    %30 = arith.select %27, %25, %29 : vector<32x64xi1>, vector<32x64xf32>
    %31 = arith.truncf %16 : vector<32x64xf32> to vector<32x64xbf16>
    %c0_20 = arith.constant 0 : index
    %c0_21 = arith.constant 0 : index
    %c0_22 = arith.constant 0 : index
    %32 = vector.load %arg5[%c0_20, %c0_21, %c0_22] : memref<2x64x64xbf16, #tpu.memory_space<vmem>>, vector<1x64x64xbf16>
    %33 = vector.shape_cast %32 : vector<1x64x64xbf16> to vector<64x64xbf16>
    %cst_23 = arith.constant dense<0.000000e+00> : vector<32x64xf32>
    %34 = tpu.matmul %31, %33, %cst_23 {dimension_numbers = #tpu.dot_dimension_numbers<[1], [0], [0], [1], [0, 0, 1, 1], [], []>} : vector<32x64xbf16>, vector<64x64xbf16>, vector<32x64xf32> -> vector<32x64xf32>
    %35 = arith.truncf %30 : vector<32x64xf32> to vector<32x64xbf16>
    %c1_24 = arith.constant 1 : index
    %c0_25 = arith.constant 0 : index
    %c0_26 = arith.constant 0 : index
    %36 = vector.load %arg5[%c1_24, %c0_25, %c0_26] : memref<2x64x64xbf16, #tpu.memory_space<vmem>>, vector<1x64x64xbf16>
    %37 = vector.shape_cast %36 : vector<1x64x64xbf16> to vector<64x64xbf16>
    %cst_27 = arith.constant dense<0.000000e+00> : vector<32x64xf32>
    %38 = tpu.matmul %35, %37, %cst_27 {dimension_numbers = #tpu.dot_dimension_numbers<[1], [0], [0], [1], [0, 0, 1, 1], [], []>} : vector<32x64xbf16>, vector<64x64xbf16>, vector<32x64xf32> -> vector<32x64xf32>
    %c0_28 = arith.constant 0 : index
    %c0_29 = arith.constant 0 : index
    %c0_30 = arith.constant 0 : index
    %39 = vector.load %arg6[%c0_28, %c0_29, %c0_30] : memref<2x48x32xbf16, #tpu.memory_space<vmem>>, vector<1x48x32xbf16>
    %40 = vector.shape_cast %39 : vector<1x48x32xbf16> to vector<48x32xbf16>
    %41 = arith.truncf %34 : vector<32x64xf32> to vector<32x64xbf16>
    %cst_31 = arith.constant dense<0.000000e+00> : vector<48x64xf32>
    %42 = tpu.matmul %40, %41, %cst_31 {dimension_numbers = #tpu.dot_dimension_numbers<[1], [0], [0], [1], [0, 0, 1, 1], [], []>} : vector<48x32xbf16>, vector<32x64xbf16>, vector<48x64xf32> -> vector<48x64xf32>
    %c0_32 = arith.constant 0 : index
    %c0_33 = arith.constant 0 : index
    %c0_34 = arith.constant 0 : index
    %43 = vector.load %arg7[%c0_32, %c0_33, %c0_34] : memref<2x48x64xf32, #tpu.memory_space<vmem>>, vector<1x48x64xf32>
    %44 = vector.shape_cast %43 : vector<1x48x64xf32> to vector<48x64xf32>
    %45 = arith.addf %42, %44 : vector<48x64xf32>
    %c1_35 = arith.constant 1 : index
    %c0_36 = arith.constant 0 : index
    %c0_37 = arith.constant 0 : index
    %46 = vector.load %arg6[%c1_35, %c0_36, %c0_37] : memref<2x48x32xbf16, #tpu.memory_space<vmem>>, vector<1x48x32xbf16>
    %47 = vector.shape_cast %46 : vector<1x48x32xbf16> to vector<48x32xbf16>
    %48 = arith.truncf %38 : vector<32x64xf32> to vector<32x64xbf16>
    %cst_38 = arith.constant dense<0.000000e+00> : vector<48x64xf32>
    %49 = tpu.matmul %47, %48, %cst_38 {dimension_numbers = #tpu.dot_dimension_numbers<[1], [0], [0], [1], [0, 0, 1, 1], [], []>} : vector<48x32xbf16>, vector<32x64xbf16>, vector<48x64xf32> -> vector<48x64xf32>
    %c1_39 = arith.constant 1 : index
    %c0_40 = arith.constant 0 : index
    %c0_41 = arith.constant 0 : index
    %50 = vector.load %arg7[%c1_39, %c0_40, %c0_41] : memref<2x48x64xf32, #tpu.memory_space<vmem>>, vector<1x48x64xf32>
    %51 = vector.shape_cast %50 : vector<1x48x64xf32> to vector<48x64xf32>
    %52 = arith.addf %49, %51 : vector<48x64xf32>
    %cst_42 = arith.constant dense<0xFF800000> : vector<48xf32>
    %53 = vector.multi_reduction <maximumf>, %45, %cst_42 [1] : vector<48x64xf32> to vector<48xf32>
    %54 = vector.shape_cast %53 : vector<48xf32> to vector<48x1xf32>
    %55 = vector.broadcast %54 : vector<48x1xf32> to vector<48x64xf32>
    %56 = arith.subf %45, %55 : vector<48x64xf32>
    %57 = math.exp %56 : vector<48x64xf32>
    %cst_43 = arith.constant dense<0.000000e+00> : vector<48xf32>
    %58 = vector.multi_reduction <add>, %57, %cst_43 [1] : vector<48x64xf32> to vector<48xf32>
    %59 = vector.shape_cast %58 : vector<48xf32> to vector<48x1xf32>
    %60 = tpu.reciprocal %59 {approx = true} : vector<48x1xf32> -> vector<48x1xf32>
    %61 = vector.broadcast %60 : vector<48x1xf32> to vector<48x64xf32>
    %62 = arith.mulf %57, %61 : vector<48x64xf32>
    %63 = arith.mulf %62, %52 : vector<48x64xf32>
    %64 = tpu.concatenate %62, %63 in 1 : vector<48x64xf32>, vector<48x64xf32> -> vector<48x128xf32>
    %c0_44 = arith.constant 0 : index
    %c0_45 = arith.constant 0 : index
    %65 = vector.load %arg8[%c0_44, %c0_45] : memref<48x128xf32, #tpu.memory_space<vmem>>, vector<48x128xf32>
    tpu.vector_store %arg8[%c0_44, %c0_45], %64 {strides = array<i32>} : memref<48x128xf32, #tpu.memory_space<vmem>>, vector<48x128xf32>,
    return
  }
  func.func @transform_0(%arg0: i32) -> (i32, i32) {
    %c0_i32 = arith.constant 0 : i32
    %c0_i32_0 = arith.constant 0 : i32
    return %arg0, %c0_i32 : i32, i32
  }
  func.func @transform_1(%arg0: i32) -> (i32, i32) {
    %c0_i32 = arith.constant 0 : i32
    %c0_i32_0 = arith.constant 0 : i32
    %c0_i32_1 = arith.constant 0 : i32
    return %c0_i32, %c0_i32_0 : i32, i32
  }
  func.func @transform_2(%arg0: i32) -> (i32, i32, i32) {
    %c0_i32 = arith.constant 0 : i32
    %c0_i32_0 = arith.constant 0 : i32
    %c0_i32_1 = arith.constant 0 : i32
    %c0_i32_2 = arith.constant 0 : i32
    return %c0_i32, %c0_i32_0, %c0_i32_1 : i32, i32, i32
  }
  func.func @transform_3(%arg0: i32) -> (i32, i32, i32) {
    %c0_i32 = arith.constant 0 : i32
    %c0_i32_0 = arith.constant 0 : i32
    %c0_i32_1 = arith.constant 0 : i32
    %c0_i32_2 = arith.constant 0 : i32
    return %c0_i32, %c0_i32_0, %c0_i32_1 : i32, i32, i32
  }
  func.func @transform_4(%arg0: i32) -> (i32, i32, i32) {
    %c0_i32 = arith.constant 0 : i32
    %c0_i32_0 = arith.constant 0 : i32
    %c0_i32_1 = arith.constant 0 : i32
    %c0_i32_2 = arith.constant 0 : i32
    return %c0_i32, %c0_i32_0, %c0_i32_1 : i32, i32, i32
  }
  func.func @transform_5(%arg0: i32) -> (i32, i32, i32) {
    %c0_i32 = arith.constant 0 : i32
    %c0_i32_0 = arith.constant 0 : i32
    %c0_i32_1 = arith.constant 0 : i32
    %c0_i32_2 = arith.constant 0 : i32
    return %c0_i32, %c0_i32_0, %c0_i32_1 : i32, i32, i32
  }
  func.func @transform_6(%arg0: i32) -> (i32, i32, i32) {
    %c0_i32 = arith.constant 0 : i32
    %c0_i32_0 = arith.constant 0 : i32
    %c0_i32_1 = arith.constant 0 : i32
    %c0_i32_2 = arith.constant 0 : i32
    return %c0_i32, %c0_i32_0, %c0_i32_1 : i32, i32, i32
  }
  func.func @transform_7(%arg0: i32) -> (i32, i32) {
    %c0_i32 = arith.constant 0 : i32
    %c0_i32_0 = arith.constant 0 : i32
    return %arg0, %c0_i32 : i32, i32
  }
}

</mosaic_0001>

<llo_original>
// kernel: gbbmr_forward.1
$region0: #{gbbmr_forward.1}
  #allocation0 [shape = 'u32[]', space=smem, size = 0x4, offset = 0x4, fixed_abs, tag = 'smem constant byte address 0x4 - core index']
  #allocation1 [shape = 'u32[144,128]{1,0:T(1,128)}', space=vmem, size = 0x12000, scoped, tag = 'internal scratch']
  %s0 = inlined_call_operand.vmem [shape: bf16[32,32], index: 0, kind: input, shape index: {}]
  %s1 = inlined_call_operand.vmem [shape: bf16[32,128], index: 1, kind: input, shape index: {}]
  %s2 = inlined_call_operand.vmem [shape: bf16[2,32,32], index: 2, kind: input, shape index: {}]
  %s3 = inlined_call_operand.vmem [shape: f32[2,1,64], index: 3, kind: input, shape index: {}]
  %s4 = inlined_call_operand.vmem [shape: bf16[2,64,64], index: 4, kind: input, shape index: {}]
  %s5 = inlined_call_operand.vmem [shape: bf16[2,48,32], index: 5, kind: input, shape index: {}]
  %s6 = inlined_call_operand.vmem [shape: f32[2,48,64], index: 6, kind: input, shape index: {}]
  %s7 = inlined_call_operand.vmem [shape: f32[48,128], index: 7, kind: output, shape index: {}]
  %s8 = sld [smem:[#allocation0]]
  $region38: #{gbbmr_forward.1} parent=0
    _
  %s10 = ssub.s32 1, %s8
  %s11 = scalar_select 0, %s10, %s8
  // Predicated region
  $region2: #{gbbmr_forward.1} parent=0 // pred_check
    _
  $region3: #{gbbmr_forward.1} parent=0 // pred_check_branch
    %13 = sbr.rel (0) target = $region5
  $region4: #{gbbmr_forward.1} parent=0 // pred_region
    _
  $region5: #{gbbmr_forward.1} parent=0 // pred_fallthru
    _
  // Predicated region
  $region6: #{gbbmr_forward.1} parent=0 // pred_check
    _
  $region7: #{gbbmr_forward.1} parent=0 // pred_check_branch
    %15 = sbr.rel (0) target = $region9
  $region8: #{gbbmr_forward.1} parent=0 // pred_region
    _
  $region9: #{gbbmr_forward.1} parent=0 // pred_fallthru
    _
  // Predicated region
  $region10: #{gbbmr_forward.1} parent=0 // pred_check
    _
  $region11: #{gbbmr_forward.1} parent=0 // pred_check_branch
    %17 = sbr.rel (0) target = $region13
  $region12: #{gbbmr_forward.1} parent=0 // pred_region
    _
  $region13: #{gbbmr_forward.1} parent=0 // pred_fallthru
    _
  // Predicated region
  $region14: #{gbbmr_forward.1} parent=0 // pred_check
    _
  $region15: #{gbbmr_forward.1} parent=0 // pred_check_branch
    %19 = sbr.rel (0) target = $region17
  $region16: #{gbbmr_forward.1} parent=0 // pred_region
    _
  $region17: #{gbbmr_forward.1} parent=0 // pred_fallthru
    _
  // Predicated region
  $region18: #{gbbmr_forward.1} parent=0 // pred_check
    _
  $region19: #{gbbmr_forward.1} parent=0 // pred_check_branch
    %21 = sbr.rel (0) target = $region21
  $region20: #{gbbmr_forward.1} parent=0 // pred_region
    _
  $region21: #{gbbmr_forward.1} parent=0 // pred_fallthru
    _
  // Predicated region
  $region22: #{gbbmr_forward.1} parent=0 // pred_check
    _
  $region23: #{gbbmr_forward.1} parent=0 // pred_check_branch
    %23 = sbr.rel (0) target = $region25
  $region24: #{gbbmr_forward.1} parent=0 // pred_region
    _
  $region25: #{gbbmr_forward.1} parent=0 // pred_fallthru
    _
  // Predicated region
  $region26: #{gbbmr_forward.1} parent=0 // pred_check
    _
  $region27: #{gbbmr_forward.1} parent=0 // pred_check_branch
    %25 = sbr.rel (0) target = $region29
  $region28: #{gbbmr_forward.1} parent=0 // pred_region
    _
  $region29: #{gbbmr_forward.1} parent=0 // pred_fallthru
    _
  %v27 = vld [vmem:[%s0] sm:$0xf]
  %v28 = vld [vmem:[%s0 + $0x4] sm:$0xf]
  %v29 = vld [vmem:[%s0 + $0x8] sm:$0xf]
  %v30 = vld [vmem:[%s0 + $0xc] sm:$0xf]
  %v31 = vld [vmem:[%s1] sm:$0xf]
  %v32 = vld [vmem:[%s1 + $0x4] sm:$0xf]
  %v33 = vld [vmem:[%s1 + $0x8] sm:$0xf]
  %v34 = vld [vmem:[%s1 + $0xc] sm:$0xf]
  %v39 = vunpack.c.l.b16 %v27
  %v40 = vunpack.c.l.b16 %v28
  %v41 = vunpack.c.l.b16 %v29
  %v42 = vunpack.c.l.b16 %v30
  %v43 = vpack.c.b16 %v40, %v39
  %v44 = vpack.c.b16 %v42, %v41
  %v49 = vunpack.c.l.b16 %v31
  %v50 = vunpack.c.l.b16 %v32
  %v51 = vunpack.c.l.b16 %v33
  %v52 = vunpack.c.l.b16 %v34
  %v53 = vpack.c.b16 %v50, %v49
  %v54 = vpack.c.b16 %v52, %v51
  %vm57 = vcmask 261120
  %v59 = vsel %vm57, %v43, 0
  %v62 = vsel %vm57, %v44, 0
  %64 = vmatprep.subr.bf16.mxu0 0
  %65 = vmatpush1.bf16.msra.mxu0 0
  %66 = vmatprep.subr.bf16.mxu0 0
  %67 = vmatpush1.bf16.msra.mxu0 0
  %68 = vmatprep.subr.bf16.mxu0 0
  %69 = vmatpush1.bf16.msra.mxu0 0
  %70 = vmatprep.subr.bf16.mxu0 0
  %71 = vmatpush1.bf16.msra.mxu0 0
  %72 = vmatprep.subr.bf16.mxu0 0
  %73 = vmatpush1.bf16.msra.mxu0 0
  %74 = vmatprep.subr.bf16.mxu0 0
  %75 = vmatpush1.bf16.msra.mxu0 0
  %76 = vmatprep.subr.bf16.mxu0 0
  %77 = vmatpush1.bf16.msra.mxu0 %v54
  %78 = vmatprep.subr.bf16.mxu0 0
  %79 = vmatpush1.bf16.msra.mxu0 %v53
  %80 = vmatprep.subr.bf16.mxu0 0
  %81 = vmatpush2.bf16.msra.mxu0 0
  %82 = vmatprep.subr.bf16.mxu0 0
  %83 = vmatpush2.bf16.msra.mxu0 0
  %84 = vmatprep.subr.bf16.mxu0 0
  %85 = vmatpush2.bf16.msra.mxu0 0
  %86 = vmatprep.subr.bf16.mxu0 0
  %87 = vmatpush2.bf16.msra.mxu0 0
  %88 = vmatprep.subr.bf16.mxu0 0
  %89 = vmatpush2.bf16.msra.mxu0 0
  %90 = vmatprep.subr.bf16.mxu0 0
  %91 = vmatpush2.bf16.msra.mxu0 0
  %92 = vmatprep.subr.bf16.mxu0 0
  %93 = vmatpush2.bf16.msra.mxu0 0
  %94 = vmatprep.subr.bf16.mxu0 0
  %95 = vmatpush2.bf16.msra.mxu0 0
  %96 = vmatprep.mubr.bf16.mxu0 0
  %97 = vmatmul.mubr.bf16.gmra.mxu0 %v59
  %v98 = vpop.f32.mrf.mxu0
  %v99 = vadd.f32 0.0, %v98
  %v100 = vpop.f32.mrf.mxu0
  %v101 = vpop.f32.mrf.mxu0
  %v102 = vadd.f32 0.0, %v101
  %v103 = vpop.f32.mrf.mxu0
  %104 = vmatprep.mubr.bf16.mxu0 0
  %105 = vmatmul.mubr.bf16.gmra.mxu0 %v62
  %v106 = vpop.f32.mrf.mxu0
  %v107 = vadd.f32 0.0, %v106
  %v108 = vpop.f32.mrf.mxu0
  %v109 = vpop.f32.mrf.mxu0
  %v110 = vadd.f32 0.0, %v109
  %v111 = vpop.f32.mrf.mxu0
  %112 = vdwg.mxu0
  %v113 = vld [vmem:[%s2] sm:$0xf]
  %v114 = vld [vmem:[%s2 + $0x4] sm:$0xf]
  %v115 = vld [vmem:[%s2 + $0x8] sm:$0xf]
  %v116 = vld [vmem:[%s2 + $0xc] sm:$0xf]
  %v117 = vpack.c.bf16 %v102, %v99
  %v118 = vpack.c.bf16 %v110, %v107
  %v119 = vld [vmem:[%s3] sm:$0x1]
  %v121 = vlaneseq
  %v122 = vshrl.u32 %v121, 7
  %v123 = vsub.s32 0, %v122
  %v124 = vrot.slane %v119, %v123
  %v130 = vunpack.c.l.b16 %v113
  %v131 = vunpack.c.l.b16 %v114
  %v132 = vunpack.c.l.b16 %v115
  %v133 = vunpack.c.l.b16 %v116
  %v134 = vpack.c.b16 %v131, %v130
  %v135 = vpack.c.b16 %v133, %v132
  %v137 = vsel %vm57, %v134, 0
  %v140 = vsel %vm57, %v135, 0
  %142 = vmatprep.subr.bf16.mxu0 0
  %143 = vmatpush1.bf16.msra.mxu0 0
  %144 = vmatprep.subr.bf16.mxu0 0
  %145 = vmatpush1.bf16.msra.mxu0 0
  %146 = vmatprep.subr.bf16.mxu0 0
  %147 = vmatpush1.bf16.msra.mxu0 0
  %148 = vmatprep.subr.bf16.mxu0 0
  %149 = vmatpush1.bf16.msra.mxu0 0
  %150 = vmatprep.subr.bf16.mxu0 0
  %151 = vmatpush1.bf16.msra.mxu0 0
  %152 = vmatprep.subr.bf16.mxu0 0
  %153 = vmatpush1.bf16.msra.mxu0 0
  %154 = vmatprep.subr.bf16.mxu0 0
  %155 = vmatpush1.bf16.msra.mxu0 %v118
  %156 = vmatprep.subr.bf16.mxu0 0
  %157 = vmatpush1.bf16.msra.mxu0 %v117
  %158 = vmatprep.subr.bf16.mxu0 0
  %159 = vmatpush2.bf16.msra.mxu0 0
  %160 = vmatprep.subr.bf16.mxu0 0
  %161 = vmatpush2.bf16.msra.mxu0 0
  %162 = vmatprep.subr.bf16.mxu0 0
  %163 = vmatpush2.bf16.msra.mxu0 0
  %164 = vmatprep.subr.bf16.mxu0 0
  %165 = vmatpush2.bf16.msra.mxu0 0
  %166 = vmatprep.subr.bf16.mxu0 0
  %167 = vmatpush2.bf16.msra.mxu0 0
  %168 = vmatprep.subr.bf16.mxu0 0
  %169 = vmatpush2.bf16.msra.mxu0 0
  %170 = vmatprep.subr.bf16.mxu0 0
  %171 = vmatpush2.bf16.msra.mxu0 0
  %172 = vmatprep.subr.bf16.mxu0 0
  %173 = vmatpush2.bf16.msra.mxu0 0
  %174 = vmatprep.mubr.bf16.mxu0 0
  %175 = vmatmul.mubr.bf16.gmra.mxu0 %v137
  %v176 = vpop.f32.mrf.mxu0
  %v177 = vadd.f32 %v124, %v176
  %v178 = vpop.f32.mrf.mxu0
  %v179 = vpop.f32.mrf.mxu0
  %v180 = vadd.f32 %v124, %v179
  %v181 = vpop.f32.mrf.mxu0
  %182 = vmatprep.mubr.bf16.mxu0 0
  %183 = vmatmul.mubr.bf16.gmra.mxu0 %v140
  %v184 = vpop.f32.mrf.mxu0
  %v185 = vadd.f32 %v124, %v184
  %v186 = vpop.f32.mrf.mxu0
  %v187 = vpop.f32.mrf.mxu0
  %v188 = vadd.f32 %v124, %v187
  %v189 = vpop.f32.mrf.mxu0
  %190 = vdwg.mxu0
  %vm191 = vcmp.ge.f32.partialorder %v177, 0.0
  %vm192 = vcmp.ge.f32.partialorder %v180, 0.0
  %vm193 = vcmp.ge.f32.partialorder %v185, 0.0
  %vm194 = vcmp.ge.f32.partialorder %v188, 0.0
  %v195 = vmul.f32 %v177, 0.1
  %v196 = vmul.f32 %v180, 0.1
  %v197 = vmul.f32 %v185, 0.1
  %v198 = vmul.f32 %v188, 0.1
  %v199 = vsel %vm191, %v177, %v195
  %v200 = vsel %vm192, %v180, %v196
  %v201 = vsel %vm193, %v185, %v197
  %v202 = vsel %vm194, %v188, %v198
  %s203 = scalar_lea.vmem %s2, 16
  %v204 = vld [vmem:[%s203] sm:$0xf]
  %v205 = vld [vmem:[%s203 + $0x4] sm:$0xf]
  %v206 = vld [vmem:[%s203 + $0x8] sm:$0xf]
  %v207 = vld [vmem:[%s203 + $0xc] sm:$0xf]
  %s208 = scalar_lea.vmem %s3, 1
  %v209 = vld [vmem:[%s208] sm:$0x1]
  %v211 = vlaneseq
  %v212 = vshrl.u32 %v211, 7
  %v213 = vsub.s32 0, %v212
  %v214 = vrot.slane %v209, %v213
  %v220 = vunpack.c.l.b16 %v204
  %v221 = vunpack.c.l.b16 %v205
  %v222 = vunpack.c.l.b16 %v206
  %v223 = vunpack.c.l.b16 %v207
  %v224 = vpack.c.b16 %v221, %v220
  %v225 = vpack.c.b16 %v223, %v222
  %228 = vrot.lane.b32.xlu0 %v117, 64
  %v229 = vpop.permute.xlu0 %228
  %230 = vrot.lane.b32.xlu0 %v118, 64
  %v231 = vpop.permute.xlu0 %230
  %v235 = vsel %vm57, %v224, 0
  %v238 = vsel %vm57, %v225, 0
  %240 = vmatprep.subr.bf16.mxu0 0
  %241 = vmatpush1.bf16.msra.mxu0 0
  %242 = vmatprep.subr.bf16.mxu0 0
  %243 = vmatpush1.bf16.msra.mxu0 0
  %244 = vmatprep.subr.bf16.mxu0 0
  %245 = vmatpush1.bf16.msra.mxu0 0
  %246 = vmatprep.subr.bf16.mxu0 0
  %247 = vmatpush1.bf16.msra.mxu0 0
  %248 = vmatprep.subr.bf16.mxu0 0
  %249 = vmatpush1.bf16.msra.mxu0 0
  %250 = vmatprep.subr.bf16.mxu0 0
  %251 = vmatpush1.bf16.msra.mxu0 0
  %252 = vmatprep.subr.bf16.mxu0 0
  %253 = vmatpush1.bf16.msra.mxu0 %v231
  %254 = vmatprep.subr.bf16.mxu0 0
  %255 = vmatpush1.bf16.msra.mxu0 %v229
  %256 = vmatprep.subr.bf16.mxu0 0
  %257 = vmatpush2.bf16.msra.mxu0 0
  %258 = vmatprep.subr.bf16.mxu0 0
  %259 = vmatpush2.bf16.msra.mxu0 0
  %260 = vmatprep.subr.bf16.mxu0 0
  %261 = vmatpush2.bf16.msra.mxu0 0
  %262 = vmatprep.subr.bf16.mxu0 0
  %263 = vmatpush2.bf16.msra.mxu0 0
  %264 = vmatprep.subr.bf16.mxu0 0
  %265 = vmatpush2.bf16.msra.mxu0 0
  %266 = vmatprep.subr.bf16.mxu0 0
  %267 = vmatpush2.bf16.msra.mxu0 0
  %268 = vmatprep.subr.bf16.mxu0 0
  %269 = vmatpush2.bf16.msra.mxu0 0
  %270 = vmatprep.subr.bf16.mxu0 0
  %271 = vmatpush2.bf16.msra.mxu0 0
  %272 = vmatprep.mubr.bf16.mxu0 0
  %273 = vmatmul.mubr.bf16.gmra.mxu0 %v235
  %v274 = vpop.f32.mrf.mxu0
  %v275 = vadd.f32 %v214, %v274
  %v276 = vpop.f32.mrf.mxu0
  %v277 = vpop.f32.mrf.mxu0
  %v278 = vadd.f32 %v214, %v277
  %v279 = vpop.f32.mrf.mxu0
  %280 = vmatprep.mubr.bf16.mxu0 0
  %281 = vmatmul.mubr.bf16.gmra.mxu0 %v238
  %v282 = vpop.f32.mrf.mxu0
  %v283 = vadd.f32 %v214, %v282
  %v284 = vpop.f32.mrf.mxu0
  %v285 = vpop.f32.mrf.mxu0
  %v286 = vadd.f32 %v214, %v285
  %v287 = vpop.f32.mrf.mxu0
  %288 = vdwg.mxu0
  %vm289 = vcmp.ge.f32.partialorder %v275, 0.0
  %vm290 = vcmp.ge.f32.partialorder %v278, 0.0
  %vm291 = vcmp.ge.f32.partialorder %v283, 0.0
  %vm292 = vcmp.ge.f32.partialorder %v286, 0.0
  %v293 = vmul.f32 %v275, 0.1
  %v294 = vmul.f32 %v278, 0.1
  %v295 = vmul.f32 %v283, 0.1
  %v296 = vmul.f32 %v286, 0.1
  %v297 = vsel %vm289, %v275, %v293
  %v298 = vsel %vm290, %v278, %v294
  %v299 = vsel %vm291, %v283, %v295
  %v300 = vsel %vm292, %v286, %v296
  %v301 = vpack.c.bf16 %v200, %v199
  %v302 = vpack.c.bf16 %v202, %v201
  %v303 = vld [vmem:[%s4] sm:$0xf]
  %v304 = vld [vmem:[%s4 + $0x4] sm:$0xf]
  %v305 = vld [vmem:[%s4 + $0x8] sm:$0xf]
  %v306 = vld [vmem:[%s4 + $0xc] sm:$0xf]
  %v307 = vld [vmem:[%s4 + $0x10] sm:$0xf]
  %v308 = vld [vmem:[%s4 + $0x14] sm:$0xf]
  %v309 = vld [vmem:[%s4 + $0x18] sm:$0xf]
  %v310 = vld [vmem:[%s4 + $0x1c] sm:$0xf]
  %v319 = vunpack.c.l.b16 %v303
  %v320 = vunpack.c.l.b16 %v304
  %v321 = vunpack.c.l.b16 %v305
  %v322 = vunpack.c.l.b16 %v306
  %v323 = vunpack.c.l.b16 %v307
  %v324 = vunpack.c.l.b16 %v308
  %v325 = vunpack.c.l.b16 %v309
  %v326 = vunpack.c.l.b16 %v310
  %v327 = vpack.c.b16 %v320, %v319
  %v328 = vpack.c.b16 %v322, %v321
  %v329 = vpack.c.b16 %v324, %v323
  %v330 = vpack.c.b16 %v326, %v325
  %vm335 = vcmask 523264
  %v337 = vsel %vm335, %v301, 0
  %v340 = vsel %vm335, %v302, 0
  %342 = vmatprep.subr.bf16.mxu0 0
  %343 = vmatpush1.bf16.msra.mxu0 0
  %344 = vmatprep.subr.bf16.mxu0 0
  %345 = vmatpush1.bf16.msra.mxu0 0
  %346 = vmatprep.subr.bf16.mxu0 0
  %347 = vmatpush1.bf16.msra.mxu0 0
  %348 = vmatprep.subr.bf16.mxu0 0
  %349 = vmatpush1.bf16.msra.mxu0 0
  %350 = vmatprep.subr.bf16.mxu0 0
  %351 = vmatpush1.bf16.msra.mxu0 %v330
  %352 = vmatprep.subr.bf16.mxu0 0
  %353 = vmatpush1.bf16.msra.mxu0 %v329
  %354 = vmatprep.subr.bf16.mxu0 0
  %355 = vmatpush1.bf16.msra.mxu0 %v328
  %356 = vmatprep.subr.bf16.mxu0 0
  %357 = vmatpush1.bf16.msra.mxu0 %v327
  %358 = vmatprep.subr.bf16.mxu0 0
  %359 = vmatpush2.bf16.msra.mxu0 0
  %360 = vmatprep.subr.bf16.mxu0 0
  %361 = vmatpush2.bf16.msra.mxu0 0
  %362 = vmatprep.subr.bf16.mxu0 0
  %363 = vmatpush2.bf16.msra.mxu0 0
  %364 = vmatprep.subr.bf16.mxu0 0
  %365 = vmatpush2.bf16.msra.mxu0 0
  %366 = vmatprep.subr.bf16.mxu0 0
  %367 = vmatpush2.bf16.msra.mxu0 0
  %368 = vmatprep.subr.bf16.mxu0 0
  %369 = vmatpush2.bf16.msra.mxu0 0
  %370 = vmatprep.subr.bf16.mxu0 0
  %371 = vmatpush2.bf16.msra.mxu0 0
  %372 = vmatprep.subr.bf16.mxu0 0
  %373 = vmatpush2.bf16.msra.mxu0 0
  %374 = vmatprep.mubr.bf16.mxu0 0
  %375 = vmatmul.mubr.bf16.gmra.mxu0 %v337
  %v376 = vpop.f32.mrf.mxu0
  %v377 = vadd.f32 0.0, %v376
  %v378 = vpop.f32.mrf.mxu0
  %v379 = vpop.f32.mrf.mxu0
  %v380 = vadd.f32 0.0, %v379
  %v381 = vpop.f32.mrf.mxu0
  %382 = vmatprep.mubr.bf16.mxu0 0
  %383 = vmatmul.mubr.bf16.gmra.mxu0 %v340
  %v384 = vpop.f32.mrf.mxu0
  %v385 = vadd.f32 0.0, %v384
  %v386 = vpop.f32.mrf.mxu0
  %v387 = vpop.f32.mrf.mxu0
  %v388 = vadd.f32 0.0, %v387
  %v389 = vpop.f32.mrf.mxu0
  %390 = vdwg.mxu0
  %v391 = vpack.c.bf16 %v298, %v297
  %v392 = vpack.c.bf16 %v300, %v299
  %s393 = scalar_lea.vmem %s4, 32
  %v394 = vld [vmem:[%s393] sm:$0xf]
  %v395 = vld [vmem:[%s393 + $0x4] sm:$0xf]
  %v396 = vld [vmem:[%s393 + $0x8] sm:$0xf]
  %v397 = vld [vmem:[%s393 + $0xc] sm:$0xf]
  %v398 = vld [vmem:[%s393 + $0x10] sm:$0xf]
  %v399 = vld [vmem:[%s393 + $0x14] sm:$0xf]
  %v400 = vld [vmem:[%s393 + $0x18] sm:$0xf]
  %v401 = vld [vmem:[%s393 + $0x1c] sm:$0xf]
  %v410 = vunpack.c.l.b16 %v394
  %v411 = vunpack.c.l.b16 %v395
  %v412 = vunpack.c.l.b16 %v396
  %v413 = vunpack.c.l.b16 %v397
  %v414 = vunpack.c.l.b16 %v398
  %v415 = vunpack.c.l.b16 %v399
  %v416 = vunpack.c.l.b16 %v400
  %v417 = vunpack.c.l.b16 %v401
  %v418 = vpack.c.b16 %v411, %v410
  %v419 = vpack.c.b16 %v413, %v412
  %v420 = vpack.c.b16 %v415, %v414
  %v421 = vpack.c.b16 %v417, %v416
  %v427 = vsel %vm335, %v391, 0
  %v430 = vsel %vm335, %v392, 0
  %432 = vmatprep.subr.bf16.mxu0 0
  %433 = vmatpush1.bf16.msra.mxu0 0
  %434 = vmatprep.subr.bf16.mxu0 0
  %435 = vmatpush1.bf16.msra.mxu0 0
  %436 = vmatprep.subr.bf16.mxu0 0
  %437 = vmatpush1.bf16.msra.mxu0 0
  %438 = vmatprep.subr.bf16.mxu0 0
  %439 = vmatpush1.bf16.msra.mxu0 0
  %440 = vmatprep.subr.bf16.mxu0 0
  %441 = vmatpush1.bf16.msra.mxu0 %v421
  %442 = vmatprep.subr.bf16.mxu0 0
  %443 = vmatpush1.bf16.msra.mxu0 %v420
  %444 = vmatprep.subr.bf16.mxu0 0
  %445 = vmatpush1.bf16.msra.mxu0 %v419
  %446 = vmatprep.subr.bf16.mxu0 0
  %447 = vmatpush1.bf16.msra.mxu0 %v418
  %448 = vmatprep.subr.bf16.mxu0 0
  %449 = vmatpush2.bf16.msra.mxu0 0
  %450 = vmatprep.subr.bf16.mxu0 0
  %451 = vmatpush2.bf16.msra.mxu0 0
  %452 = vmatprep.subr.bf16.mxu0 0
  %453 = vmatpush2.bf16.msra.mxu0 0
  %454 = vmatprep.subr.bf16.mxu0 0
  %455 = vmatpush2.bf16.msra.mxu0 0
  %456 = vmatprep.subr.bf16.mxu0 0
  %457 = vmatpush2.bf16.msra.mxu0 0
  %458 = vmatprep.subr.bf16.mxu0 0
  %459 = vmatpush2.bf16.msra.mxu0 0
  %460 = vmatprep.subr.bf16.mxu0 0
  %461 = vmatpush2.bf16.msra.mxu0 0
  %462 = vmatprep.subr.bf16.mxu0 0
  %463 = vmatpush2.bf16.msra.mxu0 0
  %464 = vmatprep.mubr.bf16.mxu0 0
  %465 = vmatmul.mubr.bf16.gmra.mxu0 %v427
  %v466 = vpop.f32.mrf.mxu0
  %v467 = vadd.f32 0.0, %v466
  %v468 = vpop.f32.mrf.mxu0
  %v469 = vpop.f32.mrf.mxu0
  %v470 = vadd.f32 0.0, %v469
  %v471 = vpop.f32.mrf.mxu0
  %472 = vmatprep.mubr.bf16.mxu0 0
  %473 = vmatmul.mubr.bf16.gmra.mxu0 %v430
  %v474 = vpop.f32.mrf.mxu0
  %v475 = vadd.f32 0.0, %v474
  %v476 = vpop.f32.mrf.mxu0
  %v477 = vpop.f32.mrf.mxu0
  %v478 = vadd.f32 0.0, %v477
  %v479 = vpop.f32.mrf.mxu0
  %480 = vdwg.mxu0
  %v481 = vld [vmem:[%s5] sm:$0xf]
  %v482 = vld [vmem:[%s5 + $0x4] sm:$0xf]
  %v483 = vld [vmem:[%s5 + $0x8] sm:$0xf]
  %v484 = vld [vmem:[%s5 + $0xc] sm:$0xf]
  %v485 = vld [vmem:[%s5 + $0x10] sm:$0xf]
  %v486 = vld [vmem:[%s5 + $0x14] sm:$0xf]
  %v487 = vpack.c.bf16 %v380, %v377
  %v488 = vpack.c.bf16 %v388, %v385
  %v489 = vld [vmem:[%s6] sm:$0xff]
  %v490 = vld [vmem:[%s6 + $0x8] sm:$0xff]
  %v491 = vld [vmem:[%s6 + $0x10] sm:$0xff]
  %v492 = vld [vmem:[%s6 + $0x18] sm:$0xff]
  %v493 = vld [vmem:[%s6 + $0x20] sm:$0xff]
  %v494 = vld [vmem:[%s6 + $0x28] sm:$0xff]
  %v501 = vunpack.c.l.b16 %v481
  %v502 = vunpack.c.l.b16 %v482
  %v503 = vunpack.c.l.b16 %v483
  %v504 = vunpack.c.l.b16 %v484
  %v505 = vunpack.c.l.b16 %v485
  %v506 = vunpack.c.l.b16 %v486
  %v507 = vpack.c.b16 %v502, %v501
  %v508 = vpack.c.b16 %v504, %v503
  %v509 = vpack.c.b16 %v506, %v505
  %v511 = vsel %vm57, %v507, 0
  %v514 = vsel %vm57, %v508, 0
  %v517 = vsel %vm57, %v509, 0
  %519 = vmatprep.subr.bf16.mxu0 0
  %520 = vmatpush1.bf16.msra.mxu0 0
  %521 = vmatprep.subr.bf16.mxu0 0
  %522 = vmatpush1.bf16.msra.mxu0 0
  %523 = vmatprep.subr.bf16.mxu0 0
  %524 = vmatpush1.bf16.msra.mxu0 0
  %525 = vmatprep.subr.bf16.mxu0 0
  %526 = vmatpush1.bf16.msra.mxu0 0
  %527 = vmatprep.subr.bf16.mxu0 0
  %528 = vmatpush1.bf16.msra.mxu0 0
  %529 = vmatprep.subr.bf16.mxu0 0
  %530 = vmatpush1.bf16.msra.mxu0 0
  %531 = vmatprep.subr.bf16.mxu0 0
  %532 = vmatpush1.bf16.msra.mxu0 %v488
  %533 = vmatprep.subr.bf16.mxu0 0
  %534 = vmatpush1.bf16.msra.mxu0 %v487
  %535 = vmatprep.subr.bf16.mxu0 0
  %536 = vmatpush2.bf16.msra.mxu0 0
  %537 = vmatprep.subr.bf16.mxu0 0
  %538 = vmatpush2.bf16.msra.mxu0 0
  %539 = vmatprep.subr.bf16.mxu0 0
  %540 = vmatpush2.bf16.msra.mxu0 0
  %541 = vmatprep.subr.bf16.mxu0 0
  %542 = vmatpush2.bf16.msra.mxu0 0
  %543 = vmatprep.subr.bf16.mxu0 0
  %544 = vmatpush2.bf16.msra.mxu0 0
  %545 = vmatprep.subr.bf16.mxu0 0
  %546 = vmatpush2.bf16.msra.mxu0 0
  %547 = vmatprep.subr.bf16.mxu0 0
  %548 = vmatpush2.bf16.msra.mxu0 0
  %549 = vmatprep.subr.bf16.mxu0 0
  %550 = vmatpush2.bf16.msra.mxu0 0
  %551 = vmatprep.mubr.bf16.mxu0 0
  %552 = vmatmul.mubr.bf16.gmra.mxu0 %v511
  %v553 = vpop.f32.mrf.mxu0
  %v554 = vadd.f32 %v489, %v553
  %v555 = vpop.f32.mrf.mxu0
  %v556 = vpop.f32.mrf.mxu0
  %v557 = vadd.f32 %v490, %v556
  %v558 = vpop.f32.mrf.mxu0
  %559 = vmatprep.mubr.bf16.mxu0 0
  %560 = vmatmul.mubr.bf16.gmra.mxu0 %v514
  %v561 = vpop.f32.mrf.mxu0
  %v562 = vadd.f32 %v491, %v561
  %v563 = vpop.f32.mrf.mxu0
  %v564 = vpop.f32.mrf.mxu0
  %v565 = vadd.f32 %v492, %v564
  %v566 = vpop.f32.mrf.mxu0
  %567 = vmatprep.mubr.bf16.mxu0 0
  %568 = vmatmul.mubr.bf16.gmra.mxu0 %v517
  %v569 = vpop.f32.mrf.mxu0
  %v570 = vadd.f32 %v493, %v569
  %v571 = vpop.f32.mrf.mxu0
  %v572 = vpop.f32.mrf.mxu0
  %v573 = vadd.f32 %v494, %v572
  %v574 = vpop.f32.mrf.mxu0
  %575 = vdwg.mxu0
  %s576 = scalar_lea.vmem %s5, 24
  %v577 = vld [vmem:[%s576] sm:$0xf]
  %v578 = vld [vmem:[%s576 + $0x4] sm:$0xf]
  %v579 = vld [vmem:[%s576 + $0x8] sm:$0xf]
  %v580 = vld [vmem:[%s576 + $0xc] sm:$0xf]
  %v581 = vld [vmem:[%s576 + $0x10] sm:$0xf]
  %v582 = vld [vmem:[%s576 + $0x14] sm:$0xf]
  %v583 = vpack.c.bf16 %v470, %v467
  %v584 = vpack.c.bf16 %v478, %v475
  %s585 = scalar_lea.vmem %s6, 48
  %v586 = vld [vmem:[%s585] sm:$0xff]
  %v587 = vld [vmem:[%s585 + $0x8] sm:$0xff]
  %v588 = vld [vmem:[%s585 + $0x10] sm:$0xff]
  %v589 = vld [vmem:[%s585 + $0x18] sm:$0xff]
  %v590 = vld [vmem:[%s585 + $0x20] sm:$0xff]
  %v591 = vld [vmem:[%s585 + $0x28] sm:$0xff]
  %v598 = vunpack.c.l.b16 %v577
  %v599 = vunpack.c.l.b16 %v578
  %v600 = vunpack.c.l.b16 %v579
  %v601 = vunpack.c.l.b16 %v580
  %v602 = vunpack.c.l.b16 %v581
  %v603 = vunpack.c.l.b16 %v582
  %v604 = vpack.c.b16 %v599, %v598
  %v605 = vpack.c.b16 %v601, %v600
  %v606 = vpack.c.b16 %v603, %v602
  %v608 = vsel %vm57, %v604, 0
  %v611 = vsel %vm57, %v605, 0
  %v614 = vsel %vm57, %v606, 0
  %616 = vmatprep.subr.bf16.mxu0 0
  %617 = vmatpush1.bf16.msra.mxu0 0
  %618 = vmatprep.subr.bf16.mxu0 0
  %619 = vmatpush1.bf16.msra.mxu0 0
  %620 = vmatprep.subr.bf16.mxu0 0
  %621 = vmatpush1.bf16.msra.mxu0 0
  %622 = vmatprep.subr.bf16.mxu0 0
  %623 = vmatpush1.bf16.msra.mxu0 0
  %624 = vmatprep.subr.bf16.mxu0 0
  %625 = vmatpush1.bf16.msra.mxu0 0
  %626 = vmatprep.subr.bf16.mxu0 0
  %627 = vmatpush1.bf16.msra.mxu0 0
  %628 = vmatprep.subr.bf16.mxu0 0
  %629 = vmatpush1.bf16.msra.mxu0 %v584
  %630 = vmatprep.subr.bf16.mxu0 0
  %631 = vmatpush1.bf16.msra.mxu0 %v583
  %632 = vmatprep.subr.bf16.mxu0 0
  %633 = vmatpush2.bf16.msra.mxu0 0
  %634 = vmatprep.subr.bf16.mxu0 0
  %635 = vmatpush2.bf16.msra.mxu0 0
  %636 = vmatprep.subr.bf16.mxu0 0
  %637 = vmatpush2.bf16.msra.mxu0 0
  %638 = vmatprep.subr.bf16.mxu0 0
  %639 = vmatpush2.bf16.msra.mxu0 0
  %640 = vmatprep.subr.bf16.mxu0 0
  %641 = vmatpush2.bf16.msra.mxu0 0
  %642 = vmatprep.subr.bf16.mxu0 0
  %643 = vmatpush2.bf16.msra.mxu0 0
  %644 = vmatprep.subr.bf16.mxu0 0
  %645 = vmatpush2.bf16.msra.mxu0 0
  %646 = vmatprep.subr.bf16.mxu0 0
  %647 = vmatpush2.bf16.msra.mxu0 0
  %648 = vmatprep.mubr.bf16.mxu0 0
  %649 = vmatmul.mubr.bf16.gmra.mxu0 %v608
  %v650 = vpop.f32.mrf.mxu0
  %v651 = vadd.f32 %v586, %v650
  %v652 = vpop.f32.mrf.mxu0
  %v653 = vpop.f32.mrf.mxu0
  %v654 = vadd.f32 %v587, %v653
  %v655 = vpop.f32.mrf.mxu0
  %656 = vmatprep.mubr.bf16.mxu0 0
  %657 = vmatmul.mubr.bf16.gmra.mxu0 %v611
  %v658 = vpop.f32.mrf.mxu0
  %v659 = vadd.f32 %v588, %v658
  %v660 = vpop.f32.mrf.mxu0
  %v661 = vpop.f32.mrf.mxu0
  %v662 = vadd.f32 %v589, %v661
  %v663 = vpop.f32.mrf.mxu0
  %664 = vmatprep.mubr.bf16.mxu0 0
  %665 = vmatmul.mubr.bf16.gmra.mxu0 %v614
  %v666 = vpop.f32.mrf.mxu0
  %v667 = vadd.f32 %v590, %v666
  %v668 = vpop.f32.mrf.mxu0
  %v669 = vpop.f32.mrf.mxu0
  %v670 = vadd.f32 %v591, %v669
  %v671 = vpop.f32.mrf.mxu0
  %672 = vdwg.mxu0
  %v673 = vsel %vm335, %v554, -inf
  %674 = vmax.xlane.f32.xlu0 %v673
  %v675 = vpop.xlane.xlu0 %674
  %v676 = vsel %vm335, %v557, -inf
  %677 = vmax.xlane.f32.xlu0 %v676
  %v678 = vpop.xlane.xlu0 %677
  %v679 = vsel %vm335, %v562, -inf
  %680 = vmax.xlane.f32.xlu0 %v679
  %v681 = vpop.xlane.xlu0 %680
  %v682 = vsel %vm335, %v565, -inf
  %683 = vmax.xlane.f32.xlu0 %v682
  %v684 = vpop.xlane.xlu0 %683
  %v685 = vsel %vm335, %v570, -inf
  %686 = vmax.xlane.f32.xlu0 %v685
  %v687 = vpop.xlane.xlu0 %686
  %v688 = vsel %vm335, %v573, -inf
  %689 = vmax.xlane.f32.xlu0 %v688
  %v690 = vpop.xlane.xlu0 %689
  %v691 = vsub.f32 %v554, %v675
  %v692 = vsub.f32 %v557, %v678
  %v693 = vsub.f32 %v562, %v681
  %v694 = vsub.f32 %v565, %v684
  %v695 = vsub.f32 %v570, %v687
  %v696 = vsub.f32 %v573, %v690
  %v697 = vmul.f32 %v691, 1.442695
  %v698 = vpow.pop %v697
  %v699 = vmul.f32 %v692, 1.442695
  %v700 = vpow.pop %v699
  %v701 = vmul.f32 %v693, 1.442695
  %v702 = vpow.pop %v701
  %v703 = vmul.f32 %v694, 1.442695
  %v704 = vpow.pop %v703
  %v705 = vmul.f32 %v695, 1.442695
  %v706 = vpow.pop %v705
  %v707 = vmul.f32 %v696, 1.442695
  %v708 = vpow.pop %v707
  %v709 = vsel %vm335, %v698, 0.0
  %710 = vadd.xlane.f32.xlu0 %v709
  %v711 = vpop.xlane.xlu0 %710
  %v712 = vsel %vm335, %v700, 0.0
  %713 = vadd.xlane.f32.xlu0 %v712
  %v714 = vpop.xlane.xlu0 %713
  %v715 = vsel %vm335, %v702, 0.0
  %716 = vadd.xlane.f32.xlu0 %v715
  %v717 = vpop.xlane.xlu0 %716
  %v718 = vsel %vm335, %v704, 0.0
  %719 = vadd.xlane.f32.xlu0 %v718
  %v720 = vpop.xlane.xlu0 %719
  %v721 = vsel %vm335, %v706, 0.0
  %722 = vadd.xlane.f32.xlu0 %v721
  %v723 = vpop.xlane.xlu0 %722
  %v724 = vsel %vm335, %v708, 0.0
  %725 = vadd.xlane.f32.xlu0 %v724
  %v726 = vpop.xlane.xlu0 %725
  %v727 = vrcp.pop %v711
  %v728 = vrcp.pop %v714
  %v729 = vrcp.pop %v717
  %v730 = vrcp.pop %v720
  %v731 = vrcp.pop %v723
  %v732 = vrcp.pop %v726
  %v733 = vmul.f32 %v698, %v727
  %v734 = vmul.f32 %v700, %v728
  %v735 = vmul.f32 %v702, %v729
  %v736 = vmul.f32 %v704, %v730
  %v737 = vmul.f32 %v706, %v731
  %v738 = vmul.f32 %v708, %v732
  %v739 = vmul.f32 %v733, %v651
  %v740 = vmul.f32 %v734, %v654
  %v741 = vmul.f32 %v735, %v659
  %v742 = vmul.f32 %v736, %v662
  %v743 = vmul.f32 %v737, %v667
  %v744 = vmul.f32 %v738, %v670
  %751 = vrot.lane.b32.xlu0 %v739, 64
  %v752 = vpop.permute.xlu0 %751
  %753 = vrot.lane.b32.xlu0 %v740, 64
  %v754 = vpop.permute.xlu0 %753
  %755 = vrot.lane.b32.xlu0 %v741, 64
  %v756 = vpop.permute.xlu0 %755
  %757 = vrot.lane.b32.xlu0 %v742, 64
  %v758 = vpop.permute.xlu0 %757
  %759 = vrot.lane.b32.xlu0 %v743, 64
  %v760 = vpop.permute.xlu0 %759
  %761 = vrot.lane.b32.xlu0 %v744, 64
  %v762 = vpop.permute.xlu0 %761
  %v769 = vsel %vm335, %v733, %v752
  %v770 = vsel %vm335, %v734, %v754
  %v771 = vsel %vm335, %v735, %v756
  %v772 = vsel %vm335, %v736, %v758
  %v773 = vsel %vm335, %v737, %v760
  %v774 = vsel %vm335, %v738, %v762
  %775 = vst [vmem:[%s7] sm:$0xff] %v769
  %776 = vst [vmem:[%s7 + $0x8] sm:$0xff] %v770
  %777 = vst [vmem:[%s7 + $0x10] sm:$0xff] %v771
  %778 = vst [vmem:[%s7 + $0x18] sm:$0xff] %v772
  %779 = vst [vmem:[%s7 + $0x20] sm:$0xff] %v773
  %780 = vst [vmem:[%s7 + $0x28] sm:$0xff] %v774
  // Predicated region
  $region30: #{gbbmr_forward.1} parent=0 // pred_check
    _
  $region31: #{gbbmr_forward.1} parent=0 // pred_check_branch
    %782 = sbr.rel (0) target = $region33
  $region32: #{gbbmr_forward.1} parent=0 // pred_region
    _
  $region33: #{gbbmr_forward.1} parent=0 // pred_fallthru
    _
  // Predicated region
  $region34: #{gbbmr_forward.1} parent=0 // pred_check
    _
  $region35: #{gbbmr_forward.1} parent=0 // pred_check_branch
    %784 = sbr.rel (0) target = $region37
  $region36: #{gbbmr_forward.1} parent=0 // pred_region
    _
  $region37: #{gbbmr_forward.1} parent=0 // pred_fallthru
    _

</llo_original>
